<compile_context>
chip_gen: v7x
topology: tpu7x:2x2x1
jax: 0.10.0
libtpu: 0.0.40
codegen_flags: <defaults>
</compile_context>

<pallas_src>
import functools

import jax
import jax.numpy as jnp
from jax.experimental import pallas as pl
from jax.experimental.pallas import tpu as pltpu


def _round_up(a, b):
    return ((a + b - 1) // b) * b


def generator_kernel(inv_t_ref, x_ref, w_ref, b_ref, o_ref,
                     m_sc, l_sc, z_cache, *, v_total, tv):
    p = pl.program_id(1)   # 0: project + accumulate logsumexp, 1: write out
    v = pl.program_id(2)

    @pl.when(jnp.logical_and(p == 0, v == 0))
    def _init():
        m_sc[...] = jnp.full_like(m_sc, -jnp.inf)
        l_sc[...] = jnp.zeros_like(l_sc)

    @pl.when(p == 0)
    def _project_and_accumulate():
        # Linear projection tile on the MXU, f32 accumulation.
        z = jnp.dot(x_ref[...], w_ref[...], preferred_element_type=jnp.float32)
        # Temperature as a single multiply (1/T precomputed on host) + bias.
        z = (z + b_ref[...]) * inv_t_ref[0, 0]
        # Mask padded vocab columns (only traced when V % tv != 0).
        if v_total % tv != 0:
            col = v * tv + jax.lax.broadcasted_iota(jnp.int32, z.shape, 1)
            z = jnp.where(col < v_total, z, -jnp.inf)
        # Cache the logits tile so pass 1 never re-streams the weight.
        z_cache[v] = z.astype(z_cache.dtype)
        # Online logsumexp update.
        m_prev = m_sc[...]
        m_new = jnp.maximum(m_prev, jnp.max(z, axis=-1, keepdims=True))
        l_sc[...] = (l_sc[...] * jnp.exp(m_prev - m_new)
                     + jnp.sum(jnp.exp(z - m_new), axis=-1, keepdims=True))
        m_sc[...] = m_new

    @pl.when(p == 1)
    def _finalize():
        lse = m_sc[...] + jnp.log(l_sc[...])
        z = z_cache[v].astype(jnp.float32)
        o_ref[...] = (z - lse).astype(o_ref.dtype)


def generator_forward(x, w, b, temperature, *, tm=512, tv=1024,
                      out_dtype=None, cache_dtype=jnp.float32):
    """log_softmax((x @ w + b) / temperature, axis=-1).

    x: (B, S, D); w: (D, V) (transpose of PyTorch Linear weight); b: (V,).
    Performance notes: store x and w in bf16 at the caller (no cast is done
    here -- a per-call astype would cost an extra full weight pass over HBM);
    f32 accumulation is kept on the MXU regardless.  Use cache_dtype=bf16 and
    smaller tm on v7x (64 MiB VMEM) for very large vocabs; pass
    out_dtype=bf16 to halve output writeback if downstream tolerates it.
    """
    B, S, D = x.shape
    V = w.shape[1]
    M = B * S

    out_dtype = out_dtype or x.dtype

    # Sublane tile of the M dimension depends on the packing of x's dtype.
    sub_m = {4: 8, 2: 16, 1: 32}.get(jnp.dtype(x.dtype).itemsize, 8)

    # Clamp tiles for small problems while keeping sublane/lane alignment.
    tm = min(tm, _round_up(M, sub_m))
    tv = min(tv, _round_up(V, 128))
    # v7x megacore: only the 'parallel' M axis is sharded across the 2 TCs,
    # so keep at least 2 row tiles whenever M allows it.
    if pl.cdiv(M, tm) < 2 and M > sub_m:
        tm = _round_up(pl.cdiv(M, 2), sub_m)

    n_m = pl.cdiv(M, tm)
    n_v = pl.cdiv(V, tv)

    x2 = x.reshape(M, D)
    b2 = b.reshape(1, V).astype(jnp.float32)
    inv_t = jnp.asarray(1.0 / temperature, jnp.float32).reshape(1, 1)

    # VMEM budget from the actual buffer sizes (double-buffered pipelined
    # operands + single-buffered scratch) with ~30% compiler headroom.
    xb = jnp.dtype(x.dtype).itemsize
    wb = jnp.dtype(w.dtype).itemsize
    ob = jnp.dtype(out_dtype).itemsize
    cb = jnp.dtype(cache_dtype).itemsize
    needed = (2 * tm * D * xb          # x row tile
              + 2 * D * tv * wb        # weight column tile
              + 2 * tv * 4             # bias tile
              + 2 * tm * tv * ob       # output tile
              + n_v * tm * tv * cb     # logits cache scratch
              + 4 * tm * 4)            # running max / sum-exp scratch
    vmem_limit = min(max(int(needed * 1.3) + (4 << 20), 32 << 20), 100 << 20)

    grid = (n_m, 2, n_v)
    kernel = functools.partial(generator_kernel, v_total=V, tv=tv)

    # Weight / bias tiles walk the vocab axis in pass 0 and are parked on the
    # last pass-0 block in pass 1 -> streamed from HBM exactly once per M tile.
    def w_map(i, p, v):
        return (0, v * (1 - p) + (n_v - 1) * p)

    out = pl.pallas_call(
        kernel,
        out_shape=jax.ShapeDtypeStruct((M, V), out_dtype),
        grid=grid,
        in_specs=[
            pl.BlockSpec(memory_space=pltpu.MemorySpace.SMEM),   # 1/T scalar
            pl.BlockSpec((tm, D), lambda i, p, v: (i, 0)),       # x row tile (resident over p, v)
            pl.BlockSpec((D, tv), w_map),                        # weight column tile
            pl.BlockSpec((1, tv), w_map),                        # bias tile
        ],
        # Pass 0 parks the output at block (i, 0) without writing it; pass 1
        # walks (i, v) writing each lane-dense block exactly once.
        out_specs=pl.BlockSpec((tm, tv), lambda i, p, v: (i, v * p)),
        scratch_shapes=[
            pltpu.VMEM((tm, 1), jnp.float32),        # running row max
            pltpu.VMEM((tm, 1), jnp.float32),        # running sum(exp)
            pltpu.VMEM((n_v, tm, tv), cache_dtype),  # cached logits tiles
        ],
        compiler_params=pltpu.CompilerParams(
            dimension_semantics=("parallel", "arbitrary", "arbitrary"),
            vmem_limit_bytes=vmem_limit,
        ),
    )(inv_t, x2, w, b2)
    return out.reshape(B, S, V)


if __name__ == "__main__":
    # Small shapes: batch=2, seq=8, d_model=32, vocab=128
    B, S, D, V = 2, 8, 32, 128
    key = jax.random.PRNGKey(0)
    kx, kw, kb = jax.random.split(key, 3)

    x = jax.random.normal(kx, (B, S, D), dtype=jnp.float32)
    # Deterministic "Linear" params (PyTorch shape is (V, D); we store transpose).
    w = jax.random.normal(kw, (D, V), dtype=jnp.float32) / jnp.sqrt(D)
    b = jax.random.normal(kb, (V,), dtype=jnp.float32) * 0.01
    temperature = 0.7

    out = generator_forward(x, w, b, temperature)
    out = jax.block_until_ready(out)

    # Pure-JAX reference check of F.log_softmax(proj(x)/T, dim=-1).
    logits = (jnp.einsum("bsd,dv->bsv", x, w) + b) / temperature
    ref = jax.nn.log_softmax(logits, axis=-1)
    assert out.shape == (B, S, V)
    assert jnp.allclose(out, ref, atol=1e-5, rtol=1e-5)
    # Guard the "parked output block" semantics: first vocab tile of every row
    # block must be correct (it is the block written while its index is parked).
    assert jnp.allclose(out[..., :128], ref[..., :128], atol=1e-5, rtol=1e-5)

    print("KERNEL_OK")
</pallas_src>

<mosaic_0001>
module attributes {stable_mosaic.version = 11 : i64} {
  func.func @generator_kernel(%arg0: i32, %arg1: i32, %arg2: i32, %arg3: memref<1x1xf32, #tpu.memory_space<smem>>, %arg4: memref<8x32xf32, #tpu.memory_space<vmem>>, %arg5: memref<32x128xf32, #tpu.memory_space<vmem>>, %arg6: memref<1x128xf32, #tpu.memory_space<vmem>>, %arg7: memref<8x128xf32, #tpu.memory_space<vmem>>, %arg8: memref<8x1xf32, #tpu.memory_space<vmem>>, %arg9: memref<8x1xf32, #tpu.memory_space<vmem>>, %arg10: memref<1x8x128xf32, #tpu.memory_space<vmem>>) attributes {dimension_semantics = [#tpu.dimension_semantics<parallel>, #tpu.dimension_semantics<arbitrary>, #tpu.dimension_semantics<arbitrary>], iteration_bounds = array<i64: 2, 2, 1>, scalar_prefetch = 0 : i64, scratch_operands = 3 : i64, tpu.core_type = #tpu.core_type<tc>, window_params = [{transform_indices = @transform_0, window_bounds = array<i64: 1, 1>}, {transform_indices = @transform_1, window_bounds = array<i64: 8, 32>}, {transform_indices = @transform_2, window_bounds = array<i64: 32, 128>}, {transform_indices = @transform_3, window_bounds = array<i64: 1, 128>}, {transform_indices = @transform_4, window_bounds = array<i64: 8, 128>}]} {
    %c0_i32 = arith.constant 0 : i32
    %0 = arith.cmpi eq, %arg1, %c0_i32 : i32
    %c0_i32_0 = arith.constant 0 : i32
    %1 = arith.cmpi eq, %arg2, %c0_i32_0 : i32
    %2 = arith.andi %0, %1 : i1
    %3 = arith.extui %2 : i1 to i32
    %c0_i32_1 = arith.constant 0 : i32
    %4 = arith.cmpi ne, %3, %c0_i32_1 : i32
    scf.if %4 {
      %cst = arith.constant 0xFF800000 : f32
      %11 = vector.broadcast %cst : f32 to vector<8x1xf32>
      %c0 = arith.constant 0 : index
      %c0_5 = arith.constant 0 : index
      %12 = vector.load %arg8[%c0, %c0_5] : memref<8x1xf32, #tpu.memory_space<vmem>>, vector<8x1xf32>
      tpu.vector_store %arg8[%c0, %c0_5], %11 {strides = array<i32>} : memref<8x1xf32, #tpu.memory_space<vmem>>, vector<8x1xf32>,
      %cst_6 = arith.constant 0.000000e+00 : f32
      %13 = vector.broadcast %cst_6 : f32 to vector<8x1xf32>
      %c0_7 = arith.constant 0 : index
      %c0_8 = arith.constant 0 : index
      %14 = vector.load %arg9[%c0_7, %c0_8] : memref<8x1xf32, #tpu.memory_space<vmem>>, vector<8x1xf32>
      tpu.vector_store %arg9[%c0_7, %c0_8], %13 {strides = array<i32>} : memref<8x1xf32, #tpu.memory_space<vmem>>, vector<8x1xf32>,
    } else {
    }
    %c0_i32_2 = arith.constant 0 : i32
    %5 = arith.cmpi eq, %arg1, %c0_i32_2 : i32
    %6 = arith.extui %5 : i1 to i32
    %c0_i32_3 = arith.constant 0 : i32
    %7 = arith.cmpi ne, %6, %c0_i32_3 : i32
    scf.if %7 {
      %c0 = arith.constant 0 : index
      %c0_5 = arith.constant 0 : index
      %11 = vector.load %arg4[%c0, %c0_5] : memref<8x32xf32, #tpu.memory_space<vmem>>, vector<8x32xf32>
      %c0_6 = arith.constant 0 : index
      %c0_7 = arith.constant 0 : index
      %12 = vector.load %arg5[%c0_6, %c0_7] : memref<32x128xf32, #tpu.memory_space<vmem>>, vector<32x128xf32>
      %cst = arith.constant dense<0.000000e+00> : vector<8x128xf32>
      %13 = tpu.matmul %11, %12, %cst {dimension_numbers = #tpu.dot_dimension_numbers<[1], [0], [0], [1], [0, 0, 1, 1], [], []>} : vector<8x32xf32>, vector<32x128xf32>, vector<8x128xf32> -> vector<8x128xf32>
      %c0_8 = arith.constant 0 : index
      %c0_9 = arith.constant 0 : index
      %14 = vector.load %arg6[%c0_8, %c0_9] : memref<1x128xf32, #tpu.memory_space<vmem>>, vector<1x128xf32>
      %15 = vector.broadcast %14 : vector<1x128xf32> to vector<8x128xf32>
      %16 = arith.addf %13, %15 : vector<8x128xf32>
      %c0_10 = arith.constant 0 : index
      %c0_11 = arith.constant 0 : index
      %17 = memref.load %arg3[%c0_10, %c0_11] : memref<1x1xf32, #tpu.memory_space<smem>>
      %18 = vector.broadcast %17 : f32 to vector<8x128xf32>
      %19 = arith.mulf %16, %18 : vector<8x128xf32>
      %20 = arith.index_cast %arg2 : i32 to index
      %c0_12 = arith.constant 0 : index
      %c0_13 = arith.constant 0 : index
      %21 = vector.load %arg10[%20, %c0_12, %c0_13] : memref<1x8x128xf32, #tpu.memory_space<vmem>>, vector<1x8x128xf32>
      %22 = vector.shape_cast %21 : vector<1x8x128xf32> to vector<8x128xf32>
      %23 = vector.shape_cast %19 : vector<8x128xf32> to vector<1x8x128xf32>
      tpu.vector_store %arg10[%20, %c0_12, %c0_13], %23 {strides = array<i32>} : memref<1x8x128xf32, #tpu.memory_space<vmem>>, vector<1x8x128xf32>,
      %c0_14 = arith.constant 0 : index
      %c0_15 = arith.constant 0 : index
      %24 = vector.load %arg8[%c0_14, %c0_15] : memref<8x1xf32, #tpu.memory_space<vmem>>, vector<8x1xf32>
      %cst_16 = arith.constant dense<0xFF800000> : vector<8xf32>
      %25 = vector.multi_reduction <maximumf>, %19, %cst_16 [1] : vector<8x128xf32> to vector<8xf32>
      %26 = vector.shape_cast %25 : vector<8xf32> to vector<8x1xf32>
      %27 = arith.maximumf %24, %26 : vector<8x1xf32>
      %c0_17 = arith.constant 0 : index
      %c0_18 = arith.constant 0 : index
      %28 = vector.load %arg9[%c0_17, %c0_18] : memref<8x1xf32, #tpu.memory_space<vmem>>, vector<8x1xf32>
      %29 = arith.subf %24, %27 : vector<8x1xf32>
      %30 = math.exp %29 : vector<8x1xf32>
      %31 = arith.mulf %28, %30 : vector<8x1xf32>
      %32 = vector.broadcast %27 : vector<8x1xf32> to vector<8x128xf32>
      %33 = arith.subf %19, %32 : vector<8x128xf32>
      %34 = math.exp %33 : vector<8x128xf32>
      %cst_19 = arith.constant dense<0.000000e+00> : vector<8xf32>
      %35 = vector.multi_reduction <add>, %34, %cst_19 [1] : vector<8x128xf32> to vector<8xf32>
      %36 = vector.shape_cast %35 : vector<8xf32> to vector<8x1xf32>
      %37 = arith.addf %31, %36 : vector<8x1xf32>
      %c0_20 = arith.constant 0 : index
      %c0_21 = arith.constant 0 : index
      %38 = vector.load %arg9[%c0_20, %c0_21] : memref<8x1xf32, #tpu.memory_space<vmem>>, vector<8x1xf32>
      tpu.vector_store %arg9[%c0_20, %c0_21], %37 {strides = array<i32>} : memref<8x1xf32, #tpu.memory_space<vmem>>, vector<8x1xf32>,
      %c0_22 = arith.constant 0 : index
      %c0_23 = arith.constant 0 : index
      %39 = vector.load %arg8[%c0_22, %c0_23] : memref<8x1xf32, #tpu.memory_space<vmem>>, vector<8x1xf32>
      tpu.vector_store %arg8[%c0_22, %c0_23], %27 {strides = array<i32>} : memref<8x1xf32, #tpu.memory_space<vmem>>, vector<8x1xf32>,
    } else {
    }
    %c1_i32 = arith.constant 1 : i32
    %8 = arith.cmpi eq, %arg1, %c1_i32 : i32
    %9 = arith.extui %8 : i1 to i32
    %c0_i32_4 = arith.constant 0 : i32
    %10 = arith.cmpi ne, %9, %c0_i32_4 : i32
    scf.if %10 {
      %c0 = arith.constant 0 : index
      %c0_5 = arith.constant 0 : index
      %11 = vector.load %arg8[%c0, %c0_5] : memref<8x1xf32, #tpu.memory_space<vmem>>, vector<8x1xf32>
      %c0_6 = arith.constant 0 : index
      %c0_7 = arith.constant 0 : index
      %12 = vector.load %arg9[%c0_6, %c0_7] : memref<8x1xf32, #tpu.memory_space<vmem>>, vector<8x1xf32>
      %13 = math.log %12 : vector<8x1xf32>
      %14 = arith.addf %11, %13 : vector<8x1xf32>
      %15 = arith.index_cast %arg2 : i32 to index
      %c0_8 = arith.constant 0 : index
      %c0_9 = arith.constant 0 : index
      %16 = vector.load %arg10[%15, %c0_8, %c0_9] : memref<1x8x128xf32, #tpu.memory_space<vmem>>, vector<1x8x128xf32>
      %17 = vector.shape_cast %16 : vector<1x8x128xf32> to vector<8x128xf32>
      %18 = vector.broadcast %14 : vector<8x1xf32> to vector<8x128xf32>
      %19 = arith.subf %17, %18 : vector<8x128xf32>
      %c0_10 = arith.constant 0 : index
      %c0_11 = arith.constant 0 : index
      %20 = vector.load %arg7[%c0_10, %c0_11] : memref<8x128xf32, #tpu.memory_space<vmem>>, vector<8x128xf32>
      tpu.vector_store %arg7[%c0_10, %c0_11], %19 {strides = array<i32>} : memref<8x128xf32, #tpu.memory_space<vmem>>, vector<8x128xf32>,
    } else {
    }
    return
  }
  func.func @transform_0(%arg0: i32, %arg1: i32, %arg2: i32) -> (i32, i32) {
    %c0_i32 = arith.constant 0 : i32
    %c0_i32_0 = arith.constant 0 : i32
    %c0_i32_1 = arith.constant 0 : i32
    return %c0_i32, %c0_i32_0 : i32, i32
  }
  func.func @transform_1(%arg0: i32, %arg1: i32, %arg2: i32) -> (i32, i32) {
    %c0_i32 = arith.constant 0 : i32
    %c0_i32_0 = arith.constant 0 : i32
    return %arg0, %c0_i32 : i32, i32
  }
  func.func @transform_2(%arg0: i32, %arg1: i32, %arg2: i32) -> (i32, i32) {
    %c1_i32 = arith.constant 1 : i32
    %0 = arith.subi %c1_i32, %arg1 : i32
    %1 = arith.muli %arg2, %0 : i32
    %c0_i32 = arith.constant 0 : i32
    %2 = arith.muli %c0_i32, %arg1 : i32
    %3 = arith.addi %1, %2 : i32
    %c0_i32_0 = arith.constant 0 : i32
    %c0_i32_1 = arith.constant 0 : i32
    return %c0_i32_0, %3 : i32, i32
  }
  func.func @transform_3(%arg0: i32, %arg1: i32, %arg2: i32) -> (i32, i32) {
    %c1_i32 = arith.constant 1 : i32
    %0 = arith.subi %c1_i32, %arg1 : i32
    %1 = arith.muli %arg2, %0 : i32
    %c0_i32 = arith.constant 0 : i32
    %2 = arith.muli %c0_i32, %arg1 : i32
    %3 = arith.addi %1, %2 : i32
    %c0_i32_0 = arith.constant 0 : i32
    %c0_i32_1 = arith.constant 0 : i32
    return %c0_i32_0, %3 : i32, i32
  }
  func.func @transform_4(%arg0: i32, %arg1: i32, %arg2: i32) -> (i32, i32) {
    %0 = arith.muli %arg2, %arg1 : i32
    %c0_i32 = arith.constant 0 : i32
    return %arg0, %0 : i32, i32
  }
}

</mosaic_0001>

<llo_original>
// kernel: tpu_custom_call.1
$region0: #{tpu_custom_call.1}
  #allocation0 [shape = 'u32[]', space=smem, size = 0x4, offset = 0x4, fixed_abs, tag = 'smem constant byte address 0x4 - core index']
  #allocation1 [shape = 'u32[144,128]{1,0:T(1,128)}', space=vmem, size = 0x12000, scoped, tag = 'internal scratch']
  #allocation2 [shape = 'f32[8,1]{1,0:T(8,128)}', space=vmem, size = 0x1000, scoped, tag = 'scratch operand']
  #allocation3 [shape = 'f32[8,1]{1,0:T(8,128)}', space=vmem, size = 0x1000, scoped, tag = 'scratch operand']
  #allocation4 [shape = 'f32[1,8,128]{2,1,0:T(8,128)}', space=vmem, size = 0x1000, scoped, tag = 'scratch operand']
  #allocation5 [shape = 'f32[1,1]{1,0:T(1,128)S(6)}', space=smem, size = 0x200, scoped, tag = 'scoped memory for tpu_custom_call.1']
  %s0 = inlined_call_operand.<no memory space> [shape: f32[1,1], index: 0, kind: input, shape index: {}]
  %s1 = inlined_call_operand.hbm [shape: f32[16,32], index: 1, kind: input, shape index: {}]
  %s2 = inlined_call_operand.hbm [shape: f32[32,128], index: 2, kind: input, shape index: {}]
  %s3 = inlined_call_operand.vmem [shape: f32[1,128], index: 3, kind: input, shape index: {}]
  %s4 = inlined_call_operand.hbm [shape: f32[16,128], index: 4, kind: output, shape index: {}]
  %s5 = sld [smem:[#allocation0]]
  $region69: #{tpu_custom_call.1} parent=0
    _
  %s7 = ssub.s32 1, %s5
  %s8 = scalar_select 0, %s7, %s5
  %9 = sst [smem:[#allocation5]] %s0
  $region1: #{tpu_custom_call.1} parent=0
    #allocation6 [shape = 'u8[8192]{0}', space=vmem, size = 0x2000, scoped, tag = 'input window, operand 1']
    #allocation7 [shape = 's32[2]{0}', space=sflag, size = 0x8, scoped, tag = 'scoped memory for tpu_custom_call.1']
    #allocation8 [shape = 's32[2]{0}', space=sflag, size = 0x8, scoped, tag = 'scoped memory for tpu_custom_call.1']
    #allocation9 [shape = 'u8[32768]{0}', space=vmem, size = 0x8000, scoped, tag = 'input window, operand 2']
    #allocation10 [shape = 's32[2]{0}', space=sflag, size = 0x8, scoped, tag = 'scoped memory for tpu_custom_call.1']
    #allocation11 [shape = 'u8[8192]{0}', space=vmem, size = 0x2000, scoped, tag = 'output window, operand 0']
    %10 = vsyncpa [#allocation7], 0
    %s11 = scalar_lea.sflag [#allocation7], 1
    %12 = vsyncpa %s11, 0
    %13 = vsyncpa [#allocation10], 0
    %s14 = scalar_lea.sflag [#allocation10], 1
    %15 = vsyncpa %s14, 0
    %16 = vsyncpa [#allocation8], 0
    %s17 = scalar_lea.sflag [#allocation8], 1
    %18 = vsyncpa %s17, 0
    loop: start=0, step=1, limit=6
    $region2: #{tpu_custom_call.1} parent=1 // loop_pre_header
      _
    $region3: #{tpu_custom_call.1} parent=1 // loop_header
      %s20 = sphi 0, %s24
      %p21 = scmp.ge.s32.totalorder %s20, 6
      %s27 = sphi 0, %s46
      %s28 = sphi 0, %s42
      %s29 = sphi 0, %s38
      %s30 = sphi 0, %s27
      %s31 = sphi 0, %s28
      %s32 = sphi 0, %s29
      %s33 = sphi 0, %s30
      %s34 = sphi 0, %s31
      %s35 = sphi 0, %s32
      %s47 = sphi 0, %s47
      %s49 = sphi 0, %s47
      %s50 = sphi 0, %s49
      %s64 = sphi 0, %s50
      %s70 = sphi 0, %s72
      %s73 = sphi 0, %s70
      %s74 = sphi 0, %s73
      %s90 = sphi 0, %s74
      %s100 = sphi 0, %s102
      %s103 = sphi 0, %s100
      %s104 = sphi 0, %s103
      %s120 = sphi 0, %s104
      %s130 = sphi 0, %s132
      %s133 = sphi 0, %s130
      %s134 = sphi 0, %s133
      %s150 = sphi 0, %s134
      %s160 = sphi 0, %s162
      %s163 = sphi 0, %s160
      %s164 = sphi 0, %s163
      %s180 = sphi 0, %s164
    $region4: #{tpu_custom_call.1} parent=1 // loop_header_branch
      %23 = sbr.rel (%p21) target = $region8
    $region5: #{tpu_custom_call.1} parent=1 // loop_body
      %s25 = ssub.s32 %s20, 1
      %s26 = ssub.s32 %s20, 2
      %s36 = sadd.s32 1, %s29
      %p37 = scmp.ge.s32.totalorder %s36, 1
      %s38 = scalar_select %p37, 0, %s36
      %s39 = sadd.s32 1, %s28
      %s40 = scalar_select %p37, %s39, %s28
      %p41 = scmp.ge.s32.totalorder %s40, 2
      %s42 = scalar_select %p41, 0, %s40
      %s43 = sadd.s32 1, %s27
      %s44 = scalar_select %p41, %s43, %s27
      %p45 = scmp.ge.s32.totalorder %s44, 2
      %s46 = scalar_select %p45, 0, %s44
      %s48 = sadd.s32 %s47, 1
      %p51 = scmp.eq.s32.totalorder %s20, 3
      %p52 = scmp.ne.s32.totalorder %s47, %s49
      %p53 = scmp.eq.s32.totalorder %s20, 0
      %p54 = por %p52, %p53
      %p55 = scmp.ne.s32.totalorder %s47, %s49
      %p56 = scmp.eq.s32.totalorder %s25, 3
      %p57 = por %p55, %p56
      %p58 = scmp.ne.s32.totalorder %s49, %s50
      %p59 = scmp.eq.s32.totalorder %s25, 0
      %p60 = por %p58, %p59
      %p61 = scmp.ne.s32.totalorder %s49, %s50
      %p62 = scmp.eq.s32.totalorder %s26, 3
      %p63 = por %p61, %p62
      %p65 = scmp.ne.s32.totalorder %s50, %s64
      %p66 = scmp.eq.s32.totalorder %s26, 0
      %p67 = por %p65, %p66
      %s68 = ssub.s32 %s27, %s46
      %p69 = scmp.eq.s32.totalorder %s68, 0
      %s71 = sadd.s32 %s70, 1
      %s72 = scalar_select %p69, %s70, %s71
      %p75 = pneg %p69
      %p76 = scmp.eq.s32.totalorder %s20, 3
      %p77 = por %p75, %p76
      %p78 = scmp.ne.s32.totalorder %s70, %s73
      %p79 = scmp.eq.s32.totalorder %s20, 0
      %p80 = por %p78, %p79
      %p81 = scmp.ne.s32.totalorder %s70, %s73
      %p82 = scmp.eq.s32.totalorder %s25, 3
      %p83 = por %p81, %p82
      %p84 = scmp.ne.s32.totalorder %s73, %s74
      %p85 = scmp.eq.s32.totalorder %s25, 0
      %p86 = por %p84, %p85
      %p87 = scmp.ne.s32.totalorder %s73, %s74
      %p88 = scmp.eq.s32.totalorder %s26, 3
      %p89 = por %p87, %p88
      %p91 = scmp.ne.s32.totalorder %s74, %s90
      %p92 = scmp.eq.s32.totalorder %s26, 0
      %p93 = por %p91, %p92
      %s94 = ssub.s32 1, %s28
      %s95 = smul.u32 %s29, %s94
      %s96 = ssub.s32 1, %s42
      %s97 = smul.u32 %s38, %s96
      %s98 = ssub.s32 %s95, %s97
      %p99 = scmp.eq.s32.totalorder %s98, 0
      %s101 = sadd.s32 %s100, 1
      %s102 = scalar_select %p99, %s100, %s101
      %p105 = pneg %p99
      %p106 = scmp.eq.s32.totalorder %s20, 3
      %p107 = por %p105, %p106
      %p108 = scmp.ne.s32.totalorder %s100, %s103
      %p109 = scmp.eq.s32.totalorder %s20, 0
      %p110 = por %p108, %p109
      %p111 = scmp.ne.s32.totalorder %s100, %s103
      %p112 = scmp.eq.s32.totalorder %s25, 3
      %p113 = por %p111, %p112
      %p114 = scmp.ne.s32.totalorder %s103, %s104
      %p115 = scmp.eq.s32.totalorder %s25, 0
      %p116 = por %p114, %p115
      %p117 = scmp.ne.s32.totalorder %s103, %s104
      %p118 = scmp.eq.s32.totalorder %s26, 3
      %p119 = por %p117, %p118
      %p121 = scmp.ne.s32.totalorder %s104, %s120
      %p122 = scmp.eq.s32.totalorder %s26, 0
      %p123 = por %p121, %p122
      %s124 = ssub.s32 1, %s28
      %s125 = smul.u32 %s29, %s124
      %s126 = ssub.s32 1, %s42
      %s127 = smul.u32 %s38, %s126
      %s128 = ssub.s32 %s125, %s127
      %p129 = scmp.eq.s32.totalorder %s128, 0
      %s131 = sadd.s32 %s130, 1
      %s132 = scalar_select %p129, %s130, %s131
      %p135 = pneg %p129
      %p136 = scmp.eq.s32.totalorder %s20, 3
      %p137 = por %p135, %p136
      %p138 = scmp.ne.s32.totalorder %s130, %s133
      %p139 = scmp.eq.s32.totalorder %s20, 0
      %p140 = por %p138, %p139
      %p141 = scmp.ne.s32.totalorder %s130, %s133
      %p142 = scmp.eq.s32.totalorder %s25, 3
      %p143 = por %p141, %p142
      %p144 = scmp.ne.s32.totalorder %s133, %s134
      %p145 = scmp.eq.s32.totalorder %s25, 0
      %p146 = por %p144, %p145
      %p147 = scmp.ne.s32.totalorder %s133, %s134
      %p148 = scmp.eq.s32.totalorder %s26, 3
      %p149 = por %p147, %p148
      %p151 = scmp.ne.s32.totalorder %s134, %s150
      %p152 = scmp.eq.s32.totalorder %s26, 0
      %p153 = por %p151, %p152
      %s154 = smul.u32 %s29, %s28
      %s155 = smul.u32 %s38, %s42
      %s156 = ssub.s32 %s27, %s46
      %s157 = ssub.s32 %s154, %s155
      %s158 = sor.u32 %s156, %s157
      %p159 = scmp.eq.s32.totalorder %s158, 0
      %s161 = sadd.s32 %s160, 1
      %s162 = scalar_select %p159, %s160, %s161
      %p165 = pneg %p159
      %p166 = scmp.eq.s32.totalorder %s20, 3
      %p167 = por %p165, %p166
      %p168 = scmp.ne.s32.totalorder %s160, %s163
      %p169 = scmp.eq.s32.totalorder %s20, 0
      %p170 = por %p168, %p169
      %p171 = scmp.ne.s32.totalorder %s160, %s163
      %p172 = scmp.eq.s32.totalorder %s25, 3
      %p173 = por %p171, %p172
      %p174 = scmp.ne.s32.totalorder %s163, %s164
      %p175 = scmp.eq.s32.totalorder %s25, 0
      %p176 = por %p174, %p175
      %p177 = scmp.ne.s32.totalorder %s163, %s164
      %p178 = scmp.eq.s32.totalorder %s26, 3
      %p179 = por %p177, %p178
      %p181 = scmp.ne.s32.totalorder %s164, %s180
      %p182 = scmp.eq.s32.totalorder %s26, 0
      %p183 = por %p181, %p182
      %p184 = scmp.le.s32.totalorder 1, %s20
      %p185 = scmp.lt.s32.totalorder %s20, 5
      %p186 = pnand %p184, %p185
      %p187 = pneg %p186
      // Predicated region
      $region9: #{tpu_custom_call.1} parent=5 // pred_check
        _
      $region10: #{tpu_custom_call.1} parent=5 // pred_check_branch
        %189 = sbr.rel (%p186) target = $region12
      $region11: #{tpu_custom_call.1} parent=5 // pred_region
        %s190 = ssub.s32 %s20, 1
        // Predicated region
        $region13: #{tpu_custom_call.1} parent=11 // pred_check
          %p191 = pneg %p60
        $region14: #{tpu_custom_call.1} parent=11 // pred_check_branch
          %193 = sbr.rel (%p191) target = $region16
        $region15: #{tpu_custom_call.1} parent=11 // pred_region
          _
        $region16: #{tpu_custom_call.1} parent=11 // pred_fallthru
          _
      $region12: #{tpu_custom_call.1} parent=5 // pred_fallthru
        _
      %p194 = scmp.lt.s32.totalorder %s20, 4
      // Predicated region
      $region17: #{tpu_custom_call.1} parent=5 // pred_check
        %p195 = pneg %p194
      $region18: #{tpu_custom_call.1} parent=5 // pred_check_branch
        %197 = sbr.rel (%p195) target = $region20
      $region19: #{tpu_custom_call.1} parent=5 // pred_region
        // Predicated region
        $region21: #{tpu_custom_call.1} parent=19 // pred_check
          %p198 = pneg %p80
        $region22: #{tpu_custom_call.1} parent=19 // pred_check_branch
          %200 = sbr.rel (%p198) target = $region24
        $region23: #{tpu_custom_call.1} parent=19 // pred_region
          %s201 = sand.u32 %s70, 1
          %s202 = scalar_lea.sflag [#allocation7], %s201
          %s203 = sand.u32 %s70, 1
          %s204 = smul.addr %s203, 8
          %s205 = scalar_lea.vmem [#allocation6], %s204
          %s207 = ssub.s32 128, 128
          %208 = vsyncadd %s202, %s207
          %s209 = smul.addr %s27, 128
          %s210 = scalar_lea.hbm %s1, %s209
          %s212 = sshll.u32 %s205, 4
          %s213 = int_to_ptr.vmem [resolvable:$true] %s212
          %215 = dma.hbm_to_vmem [thread:$0]  %s210, 128, %s213, %s202
        $region24: #{tpu_custom_call.1} parent=19 // pred_fallthru
          _
        // Predicated region
        $region25: #{tpu_custom_call.1} parent=19 // pred_check
          %p216 = pneg %p110
        $region26: #{tpu_custom_call.1} parent=19 // pred_check_branch
          %218 = sbr.rel (%p216) target = $region28
        $region27: #{tpu_custom_call.1} parent=19 // pred_region
          %s219 = sand.u32 %s100, 1
          %s220 = scalar_lea.sflag [#allocation10], %s219
          %s221 = sand.u32 %s100, 1
          %s222 = smul.addr %s221, 32
          %s223 = scalar_lea.vmem [#allocation9], %s222
          %s224 = ssub.s32 1, %s28
          %s225 = smul.u32 %s29, %s224
          %s227 = ssub.s32 512, 512
          %228 = vsyncadd %s220, %s227
          %s229 = smul.addr %s225, 128
          %s230 = scalar_lea.hbm %s2, %s229
          %s231 = sshll.u32 %s223, 4
          %s232 = int_to_ptr.vmem [resolvable:$true] %s231
          %237 = dma.hbm_to_vmem [thread:$0]  %s230, 512, %s232, %s220, 128, 128, 8
        $region28: #{tpu_custom_call.1} parent=19 // pred_fallthru
          _
        // Predicated region
        $region29: #{tpu_custom_call.1} parent=19 // pred_check
          %p238 = pneg %p140
        $region30: #{tpu_custom_call.1} parent=19 // pred_check_branch
          %240 = sbr.rel (%p238) target = $region32
        $region31: #{tpu_custom_call.1} parent=19 // pred_region
          %s241 = ssub.s32 1, %s28
          %s242 = smul.u32 %s29, %s241
          %p243 = scmp.lt.s32.totalorder %s242, 0
          %s244 = scalar_select %p243, %s242, 0
          %s245 = scalar_lea.vmem %s3, %s244
          %s246 = ssub.s32 1, %s28
          %s247 = smul.u32 %s29, %s246
        $region32: #{tpu_custom_call.1} parent=19 // pred_fallthru
          _
      $region20: #{tpu_custom_call.1} parent=5 // pred_fallthru
        _
      %p248 = scmp.le.s32.totalorder 1, %s20
      %p249 = scmp.lt.s32.totalorder %s20, 5
      %p250 = pnand %p248, %p249
      %p251 = pneg %p250
      // Predicated region
      $region33: #{tpu_custom_call.1} parent=5 // pred_check
        _
      $region34: #{tpu_custom_call.1} parent=5 // pred_check_branch
        %253 = sbr.rel (%p250) target = $region36
      $region35: #{tpu_custom_call.1} parent=5 // pred_region
        %s254 = ssub.s32 %s20, 1
        %s255 = sand.u32 %s73, 1
        %s256 = scalar_lea.sflag [#allocation7], %s255
        %s257 = sand.u32 %s73, 1
        %s258 = smul.addr %s257, 8
        %s259 = scalar_lea.vmem [#allocation6], %s258
        // Predicated region
        $region37: #{tpu_custom_call.1} parent=35 // pred_check
          %p260 = pneg %p86
        $region38: #{tpu_custom_call.1} parent=35 // pred_check_branch
          %262 = sbr.rel (%p260) target = $region40
        $region39: #{tpu_custom_call.1} parent=35 // pred_region
          %263 = dma.done %s256, 128
        $region40: #{tpu_custom_call.1} parent=35 // pred_fallthru
          _
        %s264 = sand.u32 %s103, 1
        %s265 = scalar_lea.sflag [#allocation10], %s264
        %s266 = sand.u32 %s103, 1
        %s267 = smul.addr %s266, 32
        %s268 = scalar_lea.vmem [#allocation9], %s267
        // Predicated region
        $region41: #{tpu_custom_call.1} parent=35 // pred_check
          %p269 = pneg %p116
        $region42: #{tpu_custom_call.1} parent=35 // pred_check_branch
          %271 = sbr.rel (%p269) target = $region44
        $region43: #{tpu_custom_call.1} parent=35 // pred_region
          %272 = dma.done %s265, 512
        $region44: #{tpu_custom_call.1} parent=35 // pred_fallthru
          _
        %p273 = pneg %p60
        %p274 = pneg %p57
        %s275 = sand.u32 %s73, 1
        %s276 = scalar_lea.sflag [#allocation7], %s275
        %s277 = sand.u32 %s73, 1
        %s278 = smul.addr %s277, 8
        %s279 = scalar_lea.vmem [#allocation6], %s278
        %p280 = pneg %p86
        %p281 = pneg %p83
        %s282 = sand.u32 %s103, 1
        %s283 = scalar_lea.sflag [#allocation10], %s282
        %s284 = sand.u32 %s103, 1
        %s285 = smul.addr %s284, 32
        %s286 = scalar_lea.vmem [#allocation9], %s285
        %p287 = pneg %p116
        %p288 = pneg %p113
        %s289 = ssub.s32 1, %s31
        %s290 = smul.u32 %s32, %s289
        %p291 = scmp.lt.s32.totalorder %s290, 0
        %s292 = scalar_select %p291, %s290, 0
        %s293 = scalar_lea.vmem %s3, %s292
        %p294 = pneg %p146
        %p295 = pneg %p143
        %p296 = pneg %p176
        %p297 = pneg %p173
        %s298 = sand.u32 %s163, 1
        %s299 = scalar_lea.sflag [#allocation8], %s298
        %s300 = sand.u32 %s163, 1
        %s301 = smul.addr %s300, 8
        %s302 = scalar_lea.vmem [#allocation11], %s301
        %s303 = ssub.s32 1, %s31
        %s304 = smul.u32 %s32, %s303
        %s305 = ssub.s32 1, %s31
        %s306 = smul.u32 %s32, %s305
        %p307 = scmp.lt.s32.totalorder %s306, 0
        %s308 = scalar_select %p307, %s306, 0
        %s309 = scalar_lea.vmem %s3, %s308
        %s310 = ssub.s32 1, %s31
        %s311 = smul.u32 %s32, %s310
        %s312 = smul.u32 %s32, %s31
        %p313 = scmp.eq.s32.totalorder %s31, 0
        %p314 = scmp.eq.s32.totalorder %s32, 0
        %p315 = pnand %p313, %p314
        %p316 = pneg %p315
        // Predicated region
        $region45: #{tpu_custom_call.1} parent=35 // pred_check
          _
        $region46: #{tpu_custom_call.1} parent=35 // pred_check_branch
          %318 = sbr.rel (%p315) target = $region48
        $region47: #{tpu_custom_call.1} parent=35 // pred_region
          %vm319 = vcmask 7168
          %320 = vst.msk [vmem:[#allocation2] sm:$0xff] %vm319, -inf
          %321 = vst.msk [vmem:[#allocation3] sm:$0xff] %vm319, 0.0
        $region48: #{tpu_custom_call.1} parent=35 // pred_fallthru
          _
        // Predicated region
        $region49: #{tpu_custom_call.1} parent=35 // pred_check
          %p322 = pneg %p313
        $region50: #{tpu_custom_call.1} parent=35 // pred_check_branch
          %324 = sbr.rel (%p322) target = $region52
        $region51: #{tpu_custom_call.1} parent=35 // pred_region
          %v325 = vld [vmem:[%s259] sm:$0xff]
          %v326 = vld [vmem:[%s268] sm:$0xff]
          %v327 = vld [vmem:[%s268 + $0x8] sm:$0xff]
          %v328 = vld [vmem:[%s268 + $0x10] sm:$0xff]
          %v329 = vld [vmem:[%s268 + $0x18] sm:$0xff]
          %v330 = vld [vmem:[%s309] sm:$0x1]
          %v332 = vlaneseq
          %v333 = vshrl.u32 %v332, 7
          %v334 = vsub.s32 0, %v333
          %v335 = vrot.slane %v330, %v334
          %vm337 = vcmask 261120
          %v339 = vsel %vm337, %v325, 0
          %341 = vmatprep.subr.mxu0 0.0
          %342 = vmatpush1.msra.mxu0 %v326
          %343 = vmatprep.subr.mxu0 0.0
          %344 = vmatpush1.msra.mxu0 %v327
          %345 = vmatprep.subr.mxu0 0.0
          %346 = vmatpush1.msra.mxu0 %v328
          %347 = vmatprep.subr.mxu0 0.0
          %348 = vmatpush1.msra.mxu0 %v329
          %349 = vmatprep.subr.mxu0 0.0
          %350 = vmatpush1.msra.mxu0 0.0
          %351 = vmatprep.subr.mxu0 0.0
          %352 = vmatpush1.msra.mxu0 0.0
          %353 = vmatprep.subr.mxu0 0.0
          %354 = vmatpush1.msra.mxu0 0.0
          %355 = vmatprep.subr.mxu0 0.0
          %356 = vmatpush1.msra.mxu0 0.0
          %357 = vmatprep.subr.mxu0 0.0
          %358 = vmatpush1.msra.mxu0 0.0
          %359 = vmatprep.subr.mxu0 0.0
          %360 = vmatpush1.msra.mxu0 0.0
          %361 = vmatprep.subr.mxu0 0.0
          %362 = vmatpush1.msra.mxu0 0.0
          %363 = vmatprep.subr.mxu0 0.0
          %364 = vmatpush1.msra.mxu0 0.0
          %365 = vmatprep.subr.mxu0 0.0
          %366 = vmatpush1.msra.mxu0 0.0
          %367 = vmatprep.subr.mxu0 0.0
          %368 = vmatpush1.msra.mxu0 0.0
          %369 = vmatprep.subr.mxu0 0.0
          %370 = vmatpush1.msra.mxu0 0.0
          %371 = vmatprep.subr.mxu0 0.0
          %372 = vmatpush1.msra.mxu0 0.0
          %373 = vmatprep.subr.mxu0 0.0
          %374 = vmatpush1.msra.mxu0 0.0
          %375 = vmatprep.subr.mxu0 0.0
          %376 = vmatpush1.msra.mxu0 0.0
          %377 = vmatprep.subr.mxu0 0.0
          %378 = vmatpush1.msra.mxu0 0.0
          %379 = vmatprep.subr.mxu0 0.0
          %380 = vmatpush1.msra.mxu0 0.0
          %381 = vmatprep.subr.mxu0 0.0
          %382 = vmatpush1.msra.mxu0 0.0
          %383 = vmatprep.subr.mxu0 0.0
          %384 = vmatpush1.msra.mxu0 0.0
          %385 = vmatprep.subr.mxu0 0.0
          %386 = vmatpush1.msra.mxu0 0.0
          %387 = vmatprep.subr.mxu0 0.0
          %388 = vmatpush1.msra.mxu0 0.0
          %389 = vmatprep.subr.mxu0 0.0
          %390 = vmatpush1.msra.mxu0 0.0
          %391 = vmatprep.subr.mxu0 0.0
          %392 = vmatpush1.msra.mxu0 0.0
          %393 = vmatprep.subr.mxu0 0.0
          %394 = vmatpush1.msra.mxu0 0.0
          %395 = vmatprep.subr.mxu0 0.0
          %396 = vmatpush1.msra.mxu0 0.0
          %397 = vmatprep.subr.mxu0 0.0
          %398 = vmatpush1.msra.mxu0 0.0
          %399 = vmatprep.subr.mxu0 0.0
          %400 = vmatpush1.msra.mxu0 0.0
          %401 = vmatprep.subr.mxu0 0.0
          %402 = vmatpush1.msra.mxu0 0.0
          %403 = vmatprep.subr.mxu0 0.0
          %404 = vmatpush1.msra.mxu0 0.0
          %405 = vmatprep.mubr.f32.mxu0 0.0
          %406 = vmatmul.mubr.f32.gmra.mrb[0].mxu0 %v339
          %v407 = vpop.f32.mrb[0].mxu0
          %v408 = vadd.f32 %v335, %v407
          %v409 = vpop.f32.mrb[0].mxu0
          %410 = vdwg.mxu0
          %s411 = sld [smem:[#allocation5]]
          %v412 = vstv %s411
          %v413 = vmul.f32 %v408, %v412
          %s414 = smul.u32 %s32, 8
          %s415 = scalar_lea.vmem [#allocation4], %s414
          %416 = vst [vmem:[%s415] sm:$0xff] %v413
          %v417 = vld [vmem:[#allocation2] sm:$0xff]
          %418 = vmax.xlane.f32.xlu0 %v413
          %v419 = vpop.xlane.xlu0 %418
          %v420 = vmax.f32 %v417, %v419
          %v421 = vld [vmem:[#allocation3] sm:$0xff]
          %v422 = vsub.f32 %v417, %v420
          %v423 = vmul.f32 %v422, 1.442695
          %v424 = vpow.pop %v423
          %v425 = vmul.f32 %v421, %v424
          %427 = vset.pattern.permute.xlu0 0
          %428 = vperm.xlu0 %427, %v420
          %v429 = vpop.permute.xlu0 %428
          %v431 = vsub.f32 %v413, %v429
          %v432 = vmul.f32 %v431, 1.442695
          %v433 = vpow.pop %v432
          %434 = vadd.xlane.f32.xlu0 %v433
          %v435 = vpop.xlane.xlu0 %434
          %v436 = vadd.f32 %v425, %v435
          %vm437 = vcmask 7168
          %438 = vst.msk [vmem:[#allocation3] sm:$0xff] %vm437, %v436
          %439 = vst.msk [vmem:[#allocation2] sm:$0xff] %vm437, %v420
        $region52: #{tpu_custom_call.1} parent=35 // pred_fallthru
          _
        %p440 = scmp.eq.s32.totalorder %s31, 1
        // Predicated region
        $region53: #{tpu_custom_call.1} parent=35 // pred_check
          %p441 = pneg %p440
        $region54: #{tpu_custom_call.1} parent=35 // pred_check_branch
          %443 = sbr.rel (%p441) target = $region56
        $region55: #{tpu_custom_call.1} parent=35 // pred_region
          %v444 = vld [vmem:[#allocation2] sm:$0xff]
          %v445 = vld [vmem:[#allocation3] sm:$0xff]
          %v446 = vlog2.pop %v445
          %v447 = vmul.f32 %v446, 0.6931472
          %v448 = vadd.f32 %v444, %v447
          %s449 = smul.u32 %s32, 8
          %s450 = scalar_lea.vmem [#allocation4], %s449
          %v451 = vld [vmem:[%s450] sm:$0xff]
          %453 = vset.pattern.permute.xlu0 0
          %454 = vperm.xlu0 %453, %v448
          %v455 = vpop.permute.xlu0 %454
          %v457 = vsub.f32 %v451, %v455
          %458 = vst [vmem:[%s302] sm:$0xff] %v457
        $region56: #{tpu_custom_call.1} parent=35 // pred_fallthru
          _
        %s459 = sand.u32 %s163, 1
        %s460 = scalar_lea.sflag [#allocation8], %s459
        %s461 = sand.u32 %s163, 1
        %s462 = smul.addr %s461, 8
        %s463 = scalar_lea.vmem [#allocation11], %s462
        // Predicated region
        $region57: #{tpu_custom_call.1} parent=35 // pred_check
          %p464 = pneg %p173
        $region58: #{tpu_custom_call.1} parent=35 // pred_check_branch
          %466 = sbr.rel (%p464) target = $region60
        $region59: #{tpu_custom_call.1} parent=35 // pred_region
          %s467 = smul.u32 %s32, %s31
          %s469 = ssub.s32 128, 128
          %470 = vsyncadd %s460, %s469
          %s471 = sadd.s32 %s467, %s30
          %s472 = smul.addr %s471, 128
          %s473 = scalar_lea.hbm %s4, %s472
          %s475 = sshll.u32 %s463, 4
          %s476 = int_to_ptr.vmem [resolvable:$true] %s475
          %478 = dma.vmem_to_hbm [thread:$0]  %s476, 128, %s473, %s460
        $region60: #{tpu_custom_call.1} parent=35 // pred_fallthru
          _
      $region36: #{tpu_custom_call.1} parent=5 // pred_fallthru
        _
      %p479 = scmp.le.s32.totalorder 2, %s20
      // Predicated region
      $region61: #{tpu_custom_call.1} parent=5 // pred_check
        %p480 = pneg %p479
      $region62: #{tpu_custom_call.1} parent=5 // pred_check_branch
        %482 = sbr.rel (%p480) target = $region64
      $region63: #{tpu_custom_call.1} parent=5 // pred_region
        %s483 = ssub.s32 %s20, 2
        // Predicated region
        $region65: #{tpu_custom_call.1} parent=63 // pred_check
          %p484 = pneg %p179
        $region66: #{tpu_custom_call.1} parent=63 // pred_check_branch
          %486 = sbr.rel (%p484) target = $region68
        $region67: #{tpu_custom_call.1} parent=63 // pred_region
          %s487 = sand.u32 %s164, 1
          %s488 = scalar_lea.sflag [#allocation8], %s487
          %s489 = sand.u32 %s164, 1
          %s490 = smul.addr %s489, 8
          %s491 = scalar_lea.vmem [#allocation11], %s490
          %492 = dma.done %s488, 128
        $region68: #{tpu_custom_call.1} parent=63 // pred_fallthru
          _
      $region64: #{tpu_custom_call.1} parent=5 // pred_fallthru
        _
    $region6: #{tpu_custom_call.1} parent=1 // loop_footer
      %s24 = sadd.s32 1, %s20
    $region7: #{tpu_custom_call.1} parent=1 // loop_footer_branch
      %19 = sbr.rel target = $region3
    $region8: #{tpu_custom_call.1} parent=1 // loop_exit
      _
    %493 = vsyncpa [#allocation7], 1
    %s494 = scalar_lea.sflag [#allocation7], 1
    %495 = vsyncpa %s494, 1
    %496 = vsyncpa [#allocation10], 1
    %s497 = scalar_lea.sflag [#allocation10], 1
    %498 = vsyncpa %s497, 1
    %499 = vsyncpa [#allocation8], 1
    %s500 = scalar_lea.sflag [#allocation8], 1
    %501 = vsyncpa %s500, 1

</llo_original>
